<compile_context>
chip_gen: v7x
topology: tpu7x:2x2x1
jax: 0.10.0
libtpu: 0.0.40
codegen_flags: <defaults>
</compile_context>

<pallas_src>
import numpy as np
import jax
import jax.numpy as jnp
from jax.experimental import pallas as pl
from jax.experimental.pallas import tpu as pltpu


# ----------------------------------------------------------------------------
# numpy precomputation (identical to the PyTorch reference helpers)
# ----------------------------------------------------------------------------
def legpoly(mmax, lmax, x, norm='ortho', inverse=False, csphase=True):
    nmax = max(mmax, lmax)
    vdm = np.zeros((nmax, nmax, len(x)), dtype=np.float64)
    norm_factor = 1.0 if norm == 'ortho' else np.sqrt(4 * np.pi)
    norm_factor = 1.0 / norm_factor if inverse else norm_factor
    vdm[0, 0, :] = norm_factor / np.sqrt(4 * np.pi)
    for l in range(1, nmax):
        vdm[l - 1, l, :] = np.sqrt(2 * l + 1) * x * vdm[l - 1, l - 1, :]
        vdm[l, l, :] = np.sqrt(np.abs((2 * l + 1) * (1 + x) * (1 - x) / 2 / l)) * vdm[l - 1, l - 1, :]
    for l in range(2, nmax):
        for m in range(0, l - 1):
            vdm[m, l, :] = (x * np.sqrt((2 * l - 1) / (l - m) * (2 * l + 1) / (l + m)) * vdm[m, l - 1, :]
                            - np.sqrt((l + m - 1) / (l - m) * (2 * l + 1) / (2 * l - 3)
                                      * (l - m - 1) / (l + m)) * vdm[m, l - 2, :])
    if norm == 'schmidt':
        for l in range(0, nmax):
            if inverse:
                vdm[:, l, :] = vdm[:, l, :] * np.sqrt(2 * l + 1)
            else:
                vdm[:, l, :] = vdm[:, l, :] / np.sqrt(2 * l + 1)
    vdm = vdm[:mmax, :lmax]
    if csphase:
        for m in range(1, mmax, 2):
            vdm[m] *= -1
    return vdm


def _precompute_legpoly(mmax, lmax, t, norm='ortho', inverse=False, csphase=True):
    return legpoly(mmax, lmax, np.cos(t), norm=norm, inverse=inverse, csphase=csphase)


def lobatto_weights(n, a=-1.0, b=1.0, tol=1e-16, maxiter=100):
    wlg = np.zeros((n,))
    tlg = np.zeros((n,))
    vdm = np.zeros((n, n))
    for i in range(n):
        tlg[i] = -np.cos(np.pi * i / (n - 1))
    for _ in range(maxiter):
        tmp = tlg
        vdm[:, 0] = 1.0
        vdm[:, 1] = tlg
        for k in range(2, n):
            vdm[:, k] = ((2 * k - 1) * tlg * vdm[:, k - 1] - (k - 1) * vdm[:, k - 2]) / k
        tlg = tmp - (tlg * vdm[:, n - 1] - vdm[:, n - 2]) / (n * vdm[:, n - 1])
        if max(abs(tlg - tmp).flatten()) < tol:
            break
    wlg = 2.0 / (n * (n - 1) * vdm[:, n - 1] ** 2)
    tlg = (b - a) * 0.5 * tlg + (b + a) * 0.5
    wlg = wlg * (b - a) * 0.5
    return (tlg, wlg)


def make_realsht_weights(nlat, nlon, lmax=None, mmax=None, grid='lobatto',
                         norm='ortho', csphase=True):
    """Precompute the quadrature-weighted Legendre matrix, as in RealSHT.__init__."""
    if grid == 'lobatto':
        cost, w = lobatto_weights(nlat, -1, 1)
        lmax = lmax or nlat - 1
    elif grid == 'legendre-gauss':
        cost, w = np.polynomial.legendre.leggauss(nlat)
        lmax = lmax or nlat
    else:
        raise ValueError('Unknown quadrature mode')
    tq = np.flip(np.arccos(cost))
    mmax = mmax or nlon // 2 + 1
    pct = _precompute_legpoly(mmax, lmax, tq, norm=norm, csphase=csphase)
    weights = np.einsum('mlk,k->mlk', pct, w)          # (mmax, lmax, nlat)
    return jnp.asarray(weights, jnp.float32), lmax, mmax


# ----------------------------------------------------------------------------
# Generation-aware VMEM budgets (queried once at import; safe fallback).
# ----------------------------------------------------------------------------
def _vmem_capacity_bytes():
    try:
        return int(pltpu.get_tpu_info().vmem_capacity_bytes)
    except Exception:
        return 64 * 1024 * 1024          # conservative: v7x per-TC VMEM


_VMEM_CAP = _vmem_capacity_bytes()
if _VMEM_CAP <= 64 * 1024 * 1024:        # v7x (64 MiB per TensorCore)
    _BLOCK_BUDGET = 20 * 1024 * 1024     # double-buffered block working set
    _VMEM_LIMIT = 40 * 1024 * 1024       # leave headroom for Mosaic scratch
else:                                     # v5e / v6e (128 MiB physical VMEM)
    _BLOCK_BUDGET = 48 * 1024 * 1024
    _VMEM_LIMIT = 96 * 1024 * 1024


def _round_up(x, m):
    return ((x + m - 1) // m) * m


# ----------------------------------------------------------------------------
# Pallas kernel: per-m Legendre contraction for a block of Tm m's.
#   xr_ref / xi_ref : (Tm, K, TN)   real / imaginary spectra
#   w_ref           : (Tm, L, K)    quadrature-weighted Legendre polynomials
#   or_ref / oi_ref : (Tm, L, TN)
# ----------------------------------------------------------------------------
_DN = (((2,), (1,)), ((0,), (0,)))        # contract K, batch over m


def _sht_contract_kernel(xr_ref, xi_ref, w_ref, or_ref, oi_ref):
    w = w_ref[...]
    or_ref[...] = jax.lax.dot_general(w, xr_ref[...], dimension_numbers=_DN,
                                      preferred_element_type=jnp.float32)
    oi_ref[...] = jax.lax.dot_general(w, xi_ref[...], dimension_numbers=_DN,
                                      preferred_element_type=jnp.float32)


def sht_contract(xr, xi, w):
    """For each m: (L, K) @ (K, P) -> (L, P) on real & imaginary spectra.

    xr, xi: (M, K, P) float32;  w: (M, L, K) float32.
    Returns (yr, yi), each (M, L, P) float32.
    """
    M, K, P = xr.shape
    _, L, _ = w.shape

    # Sublane-friendly padding of the small spectral dims (exact: zeros).
    Kp = _round_up(K, 8)
    Lp = _round_up(L, 8)

    # ---- lane tiling: keep the large batch axis P as the lane axis ----------
    if P <= 1024:
        TN, P_pad = P, P                          # full-extent block (legal)
    else:
        TN = 1024 if _BLOCK_BUDGET >= (40 << 20) else 512
        # shrink the lane tile if even a single-m double-buffered block set
        # would not fit the budget
        while TN > 128 and 2 * 4 * (2 * Kp * TN + Lp * Kp + 2 * Lp * TN) > _BLOCK_BUDGET:
            TN //= 2
        P_pad = _round_up(P, TN)

    # ---- m tiling: as many m per step as the VMEM budget allows -------------
    per_m_bytes = 4 * (2 * Kp * TN + Lp * Kp + 2 * Lp * TN)
    Tm = max(1, min(M, _BLOCK_BUDGET // (2 * per_m_bytes)))
    # Guarantee >=2 grid blocks along a "parallel" axis so both v7x
    # TensorCores get work even when there is a single lane block.
    if P_pad // TN < 2 and M >= 2:
        Tm = min(Tm, -(-M // 2))
    M_pad = _round_up(M, Tm)

    if (M_pad, Kp, P_pad) != (M, K, P):
        xr = jnp.pad(xr, ((0, M_pad - M), (0, Kp - K), (0, P_pad - P)))
        xi = jnp.pad(xi, ((0, M_pad - M), (0, Kp - K), (0, P_pad - P)))
    if (M_pad, Lp, Kp) != (M, L, K):
        w = jnp.pad(w, ((0, M_pad - M), (0, Lp - L), (0, Kp - K)))

    # NOTE: keep the lane-block axis (ni) innermost/fastest so the weight
    # block (index_map ignores ni) is reused across consecutive steps and not
    # re-DMA'd every iteration.
    grid = (M_pad // Tm, P_pad // TN)

    yr, yi = pl.pallas_call(
        _sht_contract_kernel,
        out_shape=(jax.ShapeDtypeStruct((M_pad, Lp, P_pad), jnp.float32),
                   jax.ShapeDtypeStruct((M_pad, Lp, P_pad), jnp.float32)),
        grid=grid,
        in_specs=[
            pl.BlockSpec((Tm, Kp, TN), lambda mi, ni: (mi, 0, ni)),
            pl.BlockSpec((Tm, Kp, TN), lambda mi, ni: (mi, 0, ni)),
            pl.BlockSpec((Tm, Lp, Kp), lambda mi, ni: (mi, 0, 0)),
        ],
        out_specs=(
            pl.BlockSpec((Tm, Lp, TN), lambda mi, ni: (mi, 0, ni)),
            pl.BlockSpec((Tm, Lp, TN), lambda mi, ni: (mi, 0, ni)),
        ),
        compiler_params=pltpu.CompilerParams(
            dimension_semantics=("parallel", "parallel"),
            vmem_limit_bytes=_VMEM_LIMIT,
        ),
    )(xr, xi, w)

    return yr[:M, :L, :P], yi[:M, :L, :P]


# ----------------------------------------------------------------------------
# RealSHT forward
# ----------------------------------------------------------------------------
def real_sht_forward(x, weights):
    """x: (..., nlat, nlon) real; weights: (mmax, lmax, nlat).
    Returns complex64 tensor of shape (..., lmax, mmax)."""
    x = x.astype(jnp.float32)
    batch = x.shape[:-2]
    K = x.shape[-2]                                   # nlat
    Mw, L, Kw = weights.shape                         # mmax, lmax, nlat
    assert Kw == K

    # TODO(synk): no Pallas FFT primitive; rfft stays as XLA glue.
    xc = jnp.fft.rfft(x, axis=-1, norm='ortho')       # (..., K, nlon//2+1)
    xc = xc[..., :Mw]

    N = int(np.prod(batch)) if batch else 1
    # Real / imaginary spectra as two separate (M, K, N) operands -> no concat.
    xr = jnp.transpose(jnp.real(xc).reshape(N, K, Mw), (2, 1, 0))
    xi = jnp.transpose(jnp.imag(xc).reshape(N, K, Mw), (2, 1, 0))

    # Fold the 2*pi rfft scale into the (linear) Legendre weights.
    w_scaled = (2.0 * jnp.pi) * weights.astype(jnp.float32)

    yr, yi = sht_contract(xr, xi, w_scaled)           # (M, L, N) each

    yc = jax.lax.complex(yr, yi)                      # (M, L, N)
    yc = jnp.transpose(yc, (2, 1, 0)).reshape(*batch, L, Mw)
    return yc


# ----------------------------------------------------------------------------
if __name__ == "__main__":
    # Small config consistent with the module: nlat=8, nlon=16, lobatto grid
    # -> lmax = nlat - 1 = 7, mmax = nlon//2 + 1 = 9.  Batch (B=2, C=4).
    nlat, nlon = 8, 16
    B, C = 2, 4

    weights, lmax, mmax = make_realsht_weights(nlat, nlon, grid='lobatto')

    key = jax.random.PRNGKey(0)
    x = jax.random.normal(key, (B, C, nlat, nlon), jnp.float32)

    fwd = jax.jit(real_sht_forward)
    y = fwd(x, weights)
    jax.block_until_ready(y)

    assert y.shape == (B, C, lmax, mmax)
    assert bool(jnp.all(jnp.isfinite(jnp.abs(y))))

    # Pure-XLA reference (mirrors the torch einsums) for a correctness check.
    xc_ref = 2.0 * jnp.pi * jnp.fft.rfft(x, axis=-1, norm='ortho')[..., :mmax]
    ref_r = jnp.einsum('bckm,mlk->bclm', jnp.real(xc_ref), weights)
    ref_i = jnp.einsum('bckm,mlk->bclm', jnp.imag(xc_ref), weights)
    ref = ref_r + 1j * ref_i
    assert bool(jnp.allclose(y, ref, rtol=1e-4, atol=1e-4))

    print("KERNEL_OK")
</pallas_src>

<mosaic_0001>
module attributes {stable_mosaic.version = 11 : i64} {
  func.func @_sht_contract_kernel(%arg0: i32, %arg1: i32, %arg2: memref<5x8x8xf32, #tpu.memory_space<vmem>>, %arg3: memref<5x8x8xf32, #tpu.memory_space<vmem>>, %arg4: memref<5x8x8xf32, #tpu.memory_space<vmem>>, %arg5: memref<5x8x8xf32, #tpu.memory_space<vmem>>, %arg6: memref<5x8x8xf32, #tpu.memory_space<vmem>>) attributes {dimension_semantics = [#tpu.dimension_semantics<parallel>, #tpu.dimension_semantics<parallel>], iteration_bounds = array<i64: 2, 1>, scalar_prefetch = 0 : i64, scratch_operands = 0 : i64, tpu.core_type = #tpu.core_type<tc>, window_params = [{transform_indices = @transform_0, window_bounds = array<i64: 5, 8, 8>}, {transform_indices = @transform_1, window_bounds = array<i64: 5, 8, 8>}, {transform_indices = @transform_2, window_bounds = array<i64: 5, 8, 8>}, {transform_indices = @transform_3, window_bounds = array<i64: 5, 8, 8>}, {transform_indices = @transform_4, window_bounds = array<i64: 5, 8, 8>}]} {
    %c0 = arith.constant 0 : index
    %c0_0 = arith.constant 0 : index
    %c0_1 = arith.constant 0 : index
    %0 = vector.load %arg4[%c0, %c0_0, %c0_1] : memref<5x8x8xf32, #tpu.memory_space<vmem>>, vector<5x8x8xf32>
    %c0_2 = arith.constant 0 : index
    %c0_3 = arith.constant 0 : index
    %c0_4 = arith.constant 0 : index
    %1 = vector.load %arg2[%c0_2, %c0_3, %c0_4] : memref<5x8x8xf32, #tpu.memory_space<vmem>>, vector<5x8x8xf32>
    %cst = arith.constant dense<0.000000e+00> : vector<5x8x8xf32>
    %2 = tpu.matmul %0, %1, %cst {dimension_numbers = #tpu.dot_dimension_numbers<[2], [1], [1], [2], [0, 0, 0, 1, 1, 2], [0], [0]>} : vector<5x8x8xf32>, vector<5x8x8xf32>, vector<5x8x8xf32> -> vector<5x8x8xf32>
    %c0_5 = arith.constant 0 : index
    %c0_6 = arith.constant 0 : index
    %c0_7 = arith.constant 0 : index
    %3 = vector.load %arg5[%c0_5, %c0_6, %c0_7] : memref<5x8x8xf32, #tpu.memory_space<vmem>>, vector<5x8x8xf32>
    tpu.vector_store %arg5[%c0_5, %c0_6, %c0_7], %2 {strides = array<i32>} : memref<5x8x8xf32, #tpu.memory_space<vmem>>, vector<5x8x8xf32>,
    %c0_8 = arith.constant 0 : index
    %c0_9 = arith.constant 0 : index
    %c0_10 = arith.constant 0 : index
    %4 = vector.load %arg3[%c0_8, %c0_9, %c0_10] : memref<5x8x8xf32, #tpu.memory_space<vmem>>, vector<5x8x8xf32>
    %cst_11 = arith.constant dense<0.000000e+00> : vector<5x8x8xf32>
    %5 = tpu.matmul %0, %4, %cst_11 {dimension_numbers = #tpu.dot_dimension_numbers<[2], [1], [1], [2], [0, 0, 0, 1, 1, 2], [0], [0]>} : vector<5x8x8xf32>, vector<5x8x8xf32>, vector<5x8x8xf32> -> vector<5x8x8xf32>
    %c0_12 = arith.constant 0 : index
    %c0_13 = arith.constant 0 : index
    %c0_14 = arith.constant 0 : index
    %6 = vector.load %arg6[%c0_12, %c0_13, %c0_14] : memref<5x8x8xf32, #tpu.memory_space<vmem>>, vector<5x8x8xf32>
    tpu.vector_store %arg6[%c0_12, %c0_13, %c0_14], %5 {strides = array<i32>} : memref<5x8x8xf32, #tpu.memory_space<vmem>>, vector<5x8x8xf32>,
    return
  }
  func.func @transform_0(%arg0: i32, %arg1: i32) -> (i32, i32, i32) {
    %c0_i32 = arith.constant 0 : i32
    %c0_i32_0 = arith.constant 0 : i32
    return %arg0, %c0_i32, %arg1 : i32, i32, i32
  }
  func.func @transform_1(%arg0: i32, %arg1: i32) -> (i32, i32, i32) {
    %c0_i32 = arith.constant 0 : i32
    %c0_i32_0 = arith.constant 0 : i32
    return %arg0, %c0_i32, %arg1 : i32, i32, i32
  }
  func.func @transform_2(%arg0: i32, %arg1: i32) -> (i32, i32, i32) {
    %c0_i32 = arith.constant 0 : i32
    %c0_i32_0 = arith.constant 0 : i32
    %c0_i32_1 = arith.constant 0 : i32
    return %arg0, %c0_i32, %c0_i32_0 : i32, i32, i32
  }
  func.func @transform_3(%arg0: i32, %arg1: i32) -> (i32, i32, i32) {
    %c0_i32 = arith.constant 0 : i32
    %c0_i32_0 = arith.constant 0 : i32
    return %arg0, %c0_i32, %arg1 : i32, i32, i32
  }
  func.func @transform_4(%arg0: i32, %arg1: i32) -> (i32, i32, i32) {
    %c0_i32 = arith.constant 0 : i32
    %c0_i32_0 = arith.constant 0 : i32
    return %arg0, %c0_i32, %arg1 : i32, i32, i32
  }
}

</mosaic_0001>

<llo_original>
// kernel: custom-call
$region0: #{custom-call}
  %s0 = inlined_call_operand.vmem [shape: f32[2,4,7,9], index: 0, kind: input, shape index: {}]
  %s1 = inlined_call_operand.vmem [shape: f32[2,4,7,9], index: 1, kind: input, shape index: {}]
  %s2 = inlined_call_operand.vmem [shape: c64[2,4,7,9], index: 2, kind: output, shape index: {}]
  %s4 = scalar_lea.vmem %s2, 56
  %v5 = vld [vmem:[%s0] sm:$0xff]
  %6 = vst [vmem:[%s2] sm:$0xff] %v5
  %s7 = scalar_lea.vmem %s2, 8
  %s8 = scalar_lea.vmem %s0, 8
  %v9 = vld [vmem:[%s8] sm:$0xff]
  %10 = vst [vmem:[%s7] sm:$0xff] %v9
  %s11 = scalar_lea.vmem %s2, 16
  %s12 = scalar_lea.vmem %s0, 16
  %v13 = vld [vmem:[%s12] sm:$0xff]
  %14 = vst [vmem:[%s11] sm:$0xff] %v13
  %s15 = scalar_lea.vmem %s2, 24
  %s16 = scalar_lea.vmem %s0, 24
  %v17 = vld [vmem:[%s16] sm:$0xff]
  %18 = vst [vmem:[%s15] sm:$0xff] %v17
  %s19 = scalar_lea.vmem %s2, 32
  %s20 = scalar_lea.vmem %s0, 32
  %v21 = vld [vmem:[%s20] sm:$0xff]
  %22 = vst [vmem:[%s19] sm:$0xff] %v21
  %s23 = scalar_lea.vmem %s2, 40
  %s24 = scalar_lea.vmem %s0, 40
  %v25 = vld [vmem:[%s24] sm:$0xff]
  %26 = vst [vmem:[%s23] sm:$0xff] %v25
  %s27 = scalar_lea.vmem %s2, 48
  %s28 = scalar_lea.vmem %s0, 48
  %v29 = vld [vmem:[%s28] sm:$0xff]
  %30 = vst [vmem:[%s27] sm:$0xff] %v29
  %v31 = vld [vmem:[%s1] sm:$0xff]
  %32 = vst [vmem:[%s4] sm:$0xff] %v31
  %s33 = scalar_lea.vmem %s4, 8
  %s34 = scalar_lea.vmem %s1, 8
  %v35 = vld [vmem:[%s34] sm:$0xff]
  %36 = vst [vmem:[%s33] sm:$0xff] %v35
  %s37 = scalar_lea.vmem %s4, 16
  %s38 = scalar_lea.vmem %s1, 16
  %v39 = vld [vmem:[%s38] sm:$0xff]
  %40 = vst [vmem:[%s37] sm:$0xff] %v39
  %s41 = scalar_lea.vmem %s4, 24
  %s42 = scalar_lea.vmem %s1, 24
  %v43 = vld [vmem:[%s42] sm:$0xff]
  %44 = vst [vmem:[%s41] sm:$0xff] %v43
  %s45 = scalar_lea.vmem %s4, 32
  %s46 = scalar_lea.vmem %s1, 32
  %v47 = vld [vmem:[%s46] sm:$0xff]
  %48 = vst [vmem:[%s45] sm:$0xff] %v47
  %s49 = scalar_lea.vmem %s4, 40
  %s50 = scalar_lea.vmem %s1, 40
  %v51 = vld [vmem:[%s50] sm:$0xff]
  %52 = vst [vmem:[%s49] sm:$0xff] %v51
  %s53 = scalar_lea.vmem %s4, 48
  %s54 = scalar_lea.vmem %s1, 48
  %v55 = vld [vmem:[%s54] sm:$0xff]
  %56 = vst [vmem:[%s53] sm:$0xff] %v55

</llo_original>
